<compile_context>
chip_gen: v6e
topology: v6e:2x2x1
jax: 0.10.0
libtpu: 0.0.40
codegen_flags: <defaults>
</compile_context>

<pallas_src>
import functools
from collections.abc import Sequence

import jax
import jax.numpy as jnp
from jax.experimental import pallas as pl
from jax.experimental.pallas import tpu as pltpu

_LANE = 128
_SUBLANE = 8


def _round_up(x: int, m: int) -> int:
    return (x + m - 1) // m * m


def _tpu_vmem_capacity_bytes() -> int:
    """Physical VMEM per TensorCore; conservative fallback if unqueryable."""
    try:
        info = pltpu.get_tpu_info()
        cap = int(getattr(info, "vmem_capacity_bytes", 0))
        if cap > 0:
            return cap
    except Exception:
        pass
    return 64 * 1024 * 1024  # v7x per-TC value; safe lower bound everywhere


def _pick_tile_b(batch: int, h: int, itemsize: int) -> int:
    # Budget the double-buffered x tile at ~1/8 of physical VMEM (16 MiB on
    # v5e/v6e, 8 MiB on v7x), capped at 24 MiB / 1024 rows.
    budget = min(_tpu_vmem_capacity_bytes() // 8, 24 * 1024 * 1024)
    cap = max(_SUBLANE,
              (budget // max(1, 2 * h * itemsize)) // _SUBLANE * _SUBLANE)
    tb = min(_round_up(batch, _SUBLANE), 1024, cap)
    return max(_SUBLANE, tb)


def _vmem_limit_bytes(tile_b: int, h: int, c_pad: int,
                      x_itemsize: int, w_itemsize: int,
                      out_itemsize: int) -> int:
    need = (2 * tile_b * h * x_itemsize          # double-buffered x tile
            + h * c_pad * w_itemsize             # W (single-buffered)
            + 2 * tile_b * c_pad * out_itemsize  # double-buffered logits out
            + 6 * tile_b * c_pad * 4)            # f32 temporaries headroom
    cap = _tpu_vmem_capacity_bytes()
    return int(min(max(2 * need, 32 * 1024 * 1024), int(cap * 0.75)))


def _const_spec(shape):
    """Block-invariant operand spec: single-buffer it (frees VMEM, esp. v7x)."""
    idx = lambda i: (0, 0)
    try:
        return pl.BlockSpec(shape, idx, pipeline_mode=pl.Buffered(1))
    except Exception:  # older JAX without pipeline_mode / Buffered
        return pl.BlockSpec(shape, idx)


# ----------------------------------------------------------------------------
# Pallas kernels
# ----------------------------------------------------------------------------
def _logits_kernel(x_ref, w_ref, b_ref, o_ref):
    # x: [TB, H], w: [H, CP], b: [1, CP]  ->  o: [TB, CP]   (CP = 128-padded C)
    acc = jnp.dot(x_ref[...], w_ref[...], preferred_element_type=jnp.float32)
    o_ref[...] = (acc + b_ref[...].astype(jnp.float32)).astype(o_ref.dtype)


def _fused_ce_kernel(n_rows, n_cls, x_ref, w_ref, b_ref, lab_ref, cw_ref,
                     logits_ref, num_ref, den_ref):
    # Fused linear head + weighted CrossEntropyLoss partials.
    # PyTorch 'mean': sum_i w[y_i] * nll_i / sum_i w[y_i] — per-row num/den
    # are emitted; the wrapper does the final sum / divide.
    i = pl.program_id(0)

    logits = (jnp.dot(x_ref[...], w_ref[...], preferred_element_type=jnp.float32)
              + b_ref[...].astype(jnp.float32))                        # [TB, CP]
    logits_ref[...] = logits.astype(logits_ref.dtype)

    tb, cp = logits.shape
    col = jax.lax.broadcasted_iota(jnp.int32, (tb, cp), 1)
    row = jax.lax.broadcasted_iota(jnp.int32, (tb, cp), 0) + i * tb
    row_ok = row < n_rows                      # ragged last batch tile
    valid = row_ok & (col < n_cls)             # also mask lane-padding columns

    # Sanitize: garbage contents of a partially-OOB input block must not
    # propagate NaN/Inf through exp before the weighting zeroes them.
    logits_safe = jnp.where(valid, logits, 0.0)
    masked = jnp.where(valid, logits, -1e30)
    m = jnp.max(masked, axis=-1, keepdims=True)
    lse = m + jnp.log(jnp.sum(jnp.exp(masked - m), axis=-1, keepdims=True))

    onehot = jnp.where(row_ok & (col == lab_ref[...]), 1.0, 0.0)       # [TB, CP]
    picked = jnp.sum(logits_safe * onehot, axis=-1, keepdims=True)     # logits[i, y_i]
    w_y = jnp.sum(cw_ref[...].astype(jnp.float32) * onehot,
                  axis=-1, keepdims=True)                              # w[y_i]

    # TODO(synk): PyTorch raises on out-of-range labels; here an OOB label
    # yields w_y == 0 (and an all-invalid batch would divide by zero upstream).
    num_ref[...] = w_y * (lse - picked)        # zero for padded / OOB rows
    den_ref[...] = w_y


def _fused_bce_kernel(n_rows, n_cls, x_ref, w_ref, b_ref, lab_ref, pw_ref,
                      logits_ref, num_ref, den_ref):
    # Fused linear head + BCEWithLogitsLoss (pos_weight, 'mean') partials:
    # loss_ij = -( pw_j * t_ij * log sigma(x_ij) + (1-t_ij) * log sigma(-x_ij) )
    # with float one-hot targets t built in-kernel from int labels.
    i = pl.program_id(0)

    logits = (jnp.dot(x_ref[...], w_ref[...], preferred_element_type=jnp.float32)
              + b_ref[...].astype(jnp.float32))                        # [TB, CP]
    logits_ref[...] = logits.astype(logits_ref.dtype)

    tb, cp = logits.shape
    col = jax.lax.broadcasted_iota(jnp.int32, (tb, cp), 1)
    row = jax.lax.broadcasted_iota(jnp.int32, (tb, cp), 0) + i * tb
    valid = (row < n_rows) & (col < n_cls)

    x = jnp.where(valid, logits, 0.0)          # sanitize garbage block padding
    t = jnp.where(valid & (col == lab_ref[...]), 1.0, 0.0)
    pw = pw_ref[...].astype(jnp.float32)

    neg_abs = -jnp.abs(x)
    softplus = jnp.log1p(jnp.exp(neg_abs))
    log_sig_x = jnp.minimum(x, 0.0) - softplus        # log sigma(x)
    log_sig_nx = jnp.minimum(-x, 0.0) - softplus      # log sigma(-x)
    el = -(pw * t * log_sig_x + (1.0 - t) * log_sig_nx)
    el = jnp.where(valid, el, 0.0)
    valid_f = jnp.where(valid, 1.0, 0.0)

    num_ref[...] = jnp.sum(el, axis=-1, keepdims=True)        # per-row sum
    den_ref[...] = jnp.sum(valid_f, axis=-1, keepdims=True)   # per-row count


# ----------------------------------------------------------------------------
# pallas_call wrappers
# ----------------------------------------------------------------------------
def linear_logits(x, w_p, bias_p, *, tile_b=None):
    """Inference path: logits = x @ W + b, batch grid ("parallel"), no padding
    of x — the ragged last tile is handled by Pallas partial blocks."""
    B, H = x.shape
    c_pad = w_p.shape[1]
    x_itemsize = jnp.dtype(x.dtype).itemsize
    if tile_b is None:
        tile_b = _pick_tile_b(B, H, x_itemsize)
    tile_b = max(_SUBLANE,
                 _round_up(min(tile_b, _round_up(B, _SUBLANE)), _SUBLANE))
    nb = pl.cdiv(B, tile_b)

    vmem_limit = _vmem_limit_bytes(tile_b, H, c_pad, x_itemsize,
                                   jnp.dtype(w_p.dtype).itemsize, x_itemsize)
    cost = pl.CostEstimate(
        flops=int(2 * B * H * c_pad),
        transcendentals=0,
        bytes_accessed=int(x.size * x_itemsize
                           + w_p.size * jnp.dtype(w_p.dtype).itemsize
                           + B * c_pad * x_itemsize + c_pad * 4))

    # TODO(synk): if H grows so large that tile_b*H + H*c_pad no longer fits
    # the VMEM budget, add a second ("arbitrary") grid axis over H with an f32
    # matmul accumulator instead of one full-H block.
    out = pl.pallas_call(
        _logits_kernel,
        out_shape=jax.ShapeDtypeStruct((B, c_pad), x.dtype),
        grid_spec=pltpu.PrefetchScalarGridSpec(
            num_scalar_prefetch=0,
            grid=(nb,),
            in_specs=[
                pl.BlockSpec((tile_b, H), lambda i: (i, 0)),   # x tile
                _const_spec((H, c_pad)),                       # W (resident)
                _const_spec((1, c_pad)),                       # bias
            ],
            out_specs=pl.BlockSpec((tile_b, c_pad), lambda i: (i, 0)),
        ),
        compiler_params=pltpu.CompilerParams(
            dimension_semantics=("parallel",),
            vmem_limit_bytes=vmem_limit),
        cost_estimate=cost,
    )(x, w_p, bias_p)
    return out   # [B, c_pad]; caller trims columns if it needs exactly C


def fused_head_and_loss(x, w_p, bias_p, labels, wt_p, *, n_cls, binary,
                        tile_b=None):
    """Training path: one pallas_call for logits + per-row (CE or BCE) loss
    partials; batch axis is fully parallel (both TCs on v7x)."""
    B, H = x.shape
    c_pad = w_p.shape[1]
    x_itemsize = jnp.dtype(x.dtype).itemsize
    if tile_b is None:
        tile_b = _pick_tile_b(B, H, x_itemsize)
    tile_b = max(_SUBLANE,
                 _round_up(min(tile_b, _round_up(B, _SUBLANE)), _SUBLANE))
    nb = pl.cdiv(B, tile_b)

    lab2d = jnp.asarray(labels, jnp.int32).reshape(B, 1)
    kernel = functools.partial(
        _fused_bce_kernel if binary else _fused_ce_kernel, B, n_cls)

    vmem_limit = _vmem_limit_bytes(tile_b, H, c_pad, x_itemsize,
                                   jnp.dtype(w_p.dtype).itemsize, x_itemsize)
    cost = pl.CostEstimate(
        flops=int(2 * B * H * c_pad),
        transcendentals=int(2 * B * c_pad),
        bytes_accessed=int(x.size * x_itemsize
                           + w_p.size * jnp.dtype(w_p.dtype).itemsize
                           + B * c_pad * x_itemsize
                           + B * 4 + 2 * B * 4 + 2 * c_pad * 4))

    logits, num_rows, den_rows = pl.pallas_call(
        kernel,
        out_shape=(jax.ShapeDtypeStruct((B, c_pad), x.dtype),
                   jax.ShapeDtypeStruct((B, 1), jnp.float32),
                   jax.ShapeDtypeStruct((B, 1), jnp.float32)),
        grid_spec=pltpu.PrefetchScalarGridSpec(
            num_scalar_prefetch=0,
            grid=(nb,),
            in_specs=[
                pl.BlockSpec((tile_b, H), lambda i: (i, 0)),   # x tile
                _const_spec((H, c_pad)),                       # W (resident)
                _const_spec((1, c_pad)),                       # bias
                pl.BlockSpec((tile_b, 1), lambda i: (i, 0)),   # labels tile
                _const_spec((1, c_pad)),                       # class/pos wts
            ],
            out_specs=(
                pl.BlockSpec((tile_b, c_pad), lambda i: (i, 0)),  # logits
                pl.BlockSpec((tile_b, 1), lambda i: (i, 0)),      # num partial
                pl.BlockSpec((tile_b, 1), lambda i: (i, 0)),      # den partial
            ),
        ),
        compiler_params=pltpu.CompilerParams(
            dimension_semantics=("parallel",),
            vmem_limit_bytes=vmem_limit),
        cost_estimate=cost,
    )(x, w_p, bias_p, lab2d, wt_p)

    # Tiny B-element reduction; keeps the batch grid axis "parallel".
    loss = jnp.sum(num_rows) / jnp.sum(den_rows)
    return loss, logits   # logits [B, c_pad]


# ----------------------------------------------------------------------------
# JAX port of BaseClassif (+ minimal concrete linear head)
# ----------------------------------------------------------------------------
class BaseClassifJax:
    def __init__(self, num_labels: int, embed_dim: int,
                 label_names: Sequence[str] | None = None,
                 class_weights=None) -> None:
        if class_weights is not None:
            class_weights = jnp.asarray(class_weights, jnp.float32).reshape(-1)
            if class_weights.shape[0] != num_labels:
                raise ValueError(
                    f"Invalid number of class weights: {class_weights.shape[0]}")
        if num_labels < 2:
            raise ValueError("Invalid number of labels")
        if label_names is None:
            self.label_names = list(range(num_labels))
        elif len(label_names) == num_labels:
            self.label_names = list(label_names)
        else:
            raise ValueError("Number of labels mismatch")

        self._embed_dim = embed_dim
        self.class_weights = (class_weights if class_weights is not None
                              else jnp.ones((num_labels,), jnp.float32))

        # Deterministic head parameters (synthetic; no checkpoint load).
        kw, kb = jax.random.split(jax.random.PRNGKey(42))
        scale = 1.0 / jnp.sqrt(jnp.float32(embed_dim))
        self.W = (jax.random.normal(kw, (embed_dim, num_labels), jnp.float32)
                  * scale)
        self.b = jax.random.normal(kb, (num_labels,), jnp.float32) * 0.01

        # Pre-pad parameters / weights to the 128-lane class dim ONCE so no
        # per-step jnp.pad is needed inside forward.
        c_pad = _round_up(num_labels, _LANE)
        self.c_pad = c_pad
        self.W_p = jnp.pad(self.W, ((0, 0), (0, c_pad - num_labels)))
        self.bias_p = jnp.pad(self.b.reshape(1, num_labels).astype(jnp.float32),
                              ((0, 0), (0, c_pad - num_labels)))
        self.wt_p = jnp.pad(self.class_weights.reshape(1, num_labels),
                            ((0, 0), (0, c_pad - num_labels)))

    # ----- properties mirroring the torch base class -----
    @property
    def num_labels(self) -> int:
        return len(self.label_names)

    @property
    def is_binary(self) -> bool:
        return self.num_labels == 2

    @property
    def is_multiclass(self) -> bool:
        return self.num_labels > 2

    @property
    def id2label(self):
        return {i: l for i, l in enumerate(self.label_names)}

    @property
    def label2id(self):
        return {l: i for i, l in enumerate(self.label_names)}

    @property
    def embed_dim(self) -> int:
        return self._embed_dim

    # ----- forward -----
    # TODO(synk): BaseClassif.forward is abstract (backbone/encoder unspecified);
    # we use pooled features [B, embed_dim] directly as the encoder output.
    def forward(self, features, labels=None, *, tile_b=None, trim_logits=True):
        if labels is None:
            logits = linear_logits(features, self.W_p, self.bias_p,
                                   tile_b=tile_b)
            return logits[:, :self.num_labels] if trim_logits else logits
        loss, logits = fused_head_and_loss(
            features, self.W_p, self.bias_p, labels, self.wt_p,
            n_cls=self.num_labels, binary=self.is_binary, tile_b=tile_b)
        if trim_logits:   # cheap (logits are tiny vs. x); skip to avoid copy
            logits = logits[:, :self.num_labels]
        return loss, logits


# ----------------------------------------------------------------------------
# Pure-JAX references for a correctness sanity check
# ----------------------------------------------------------------------------
def _ref_ce(logits, labels, w):
    lse = jax.nn.logsumexp(logits, axis=-1)
    picked = jnp.take_along_axis(logits, labels[:, None], axis=-1)[:, 0]
    w_y = w[labels]
    return jnp.sum(w_y * (lse - picked)) / jnp.sum(w_y)


def _ref_bce(logits, targets, pw):
    log_sig = jax.nn.log_sigmoid(logits)
    log_sig_n = jax.nn.log_sigmoid(-logits)
    return jnp.mean(-(pw[None, :] * targets * log_sig + (1 - targets) * log_sig_n))


if __name__ == "__main__":
    key = jax.random.PRNGKey(0)
    B, H = 12, 32          # B not a multiple of tile_b -> exercises ragged tile
    TILE_B = 8             # 2 grid steps (second one partial)

    k1, k2, k3 = jax.random.split(key, 3)
    feats = jax.random.normal(k1, (B, H), jnp.float32)

    # ---- multiclass (num_labels > 2): CrossEntropyLoss with class weights ----
    C = 4
    labels_mc = jax.random.randint(k2, (B,), 0, C, jnp.int32)
    model_mc = BaseClassifJax(num_labels=C, embed_dim=H,
                              label_names=["a", "b", "c", "d"],
                              class_weights=[1.0, 2.0, 0.5, 1.5])
    loss_mc, logits_mc = model_mc.forward(feats, labels_mc, tile_b=TILE_B)
    logits_inf = model_mc.forward(feats, tile_b=TILE_B)   # inference-only path
    jax.block_until_ready((loss_mc, logits_mc, logits_inf))

    ref_logits_mc = feats @ model_mc.W + model_mc.b
    assert jnp.allclose(logits_mc, ref_logits_mc, atol=1e-4, rtol=1e-4)
    assert jnp.allclose(logits_inf, ref_logits_mc, atol=1e-4, rtol=1e-4)
    assert jnp.allclose(loss_mc,
                        _ref_ce(ref_logits_mc, labels_mc, model_mc.class_weights),
                        atol=1e-4, rtol=1e-4)

    # ---- binary (num_labels == 2): BCEWithLogitsLoss with pos_weight ----
    labels_bin = jax.random.randint(k3, (B,), 0, 2, jnp.int32)
    model_bin = BaseClassifJax(num_labels=2, embed_dim=H,
                               label_names=["neg", "pos"],
                               class_weights=[1.0, 3.0])
    loss_bin, logits_bin = model_bin.forward(feats, labels_bin, tile_b=TILE_B)
    jax.block_until_ready((loss_bin, logits_bin))

    ref_logits_bin = feats @ model_bin.W + model_bin.b
    ref_targets = jax.nn.one_hot(labels_bin, 2, dtype=jnp.float32)
    assert jnp.allclose(logits_bin, ref_logits_bin, atol=1e-4, rtol=1e-4)
    assert jnp.allclose(loss_bin,
                        _ref_bce(ref_logits_bin, ref_targets,
                                 model_bin.class_weights),
                        atol=1e-4, rtol=1e-4)

    print("KERNEL_OK")
</pallas_src>

<mosaic_0001>
module attributes {stable_mosaic.version = 11 : i64} {
  func.func @_fused_ce_kernel(%arg0: i32, %arg1: memref<8x32xf32, #tpu.memory_space<vmem>>, %arg2: memref<32x128xf32, #tpu.memory_space<vmem>>, %arg3: memref<1x128xf32, #tpu.memory_space<vmem>>, %arg4: memref<8x1xi32, #tpu.memory_space<vmem>>, %arg5: memref<1x128xf32, #tpu.memory_space<vmem>>, %arg6: memref<8x128xf32, #tpu.memory_space<vmem>>, %arg7: memref<8x1xf32, #tpu.memory_space<vmem>>, %arg8: memref<8x1xf32, #tpu.memory_space<vmem>>) attributes {dimension_semantics = [#tpu.dimension_semantics<parallel>], iteration_bounds = array<i64: 2>, scalar_prefetch = 0 : i64, scratch_operands = 0 : i64, tpu.core_type = #tpu.core_type<tc>, window_params = [{transform_indices = @transform_0, window_bounds = array<i64: 8, 32>}, {pipeline_mode = #tpu.pipeline_mode<synchronous>, transform_indices = @transform_1, window_bounds = array<i64: 32, 128>}, {pipeline_mode = #tpu.pipeline_mode<synchronous>, transform_indices = @transform_2, window_bounds = array<i64: 1, 128>}, {transform_indices = @transform_3, window_bounds = array<i64: 8, 1>}, {pipeline_mode = #tpu.pipeline_mode<synchronous>, transform_indices = @transform_4, window_bounds = array<i64: 1, 128>}, {transform_indices = @transform_5, window_bounds = array<i64: 8, 128>}, {transform_indices = @transform_6, window_bounds = array<i64: 8, 1>}, {transform_indices = @transform_7, window_bounds = array<i64: 8, 1>}]} {
    %c0 = arith.constant 0 : index
    %c0_0 = arith.constant 0 : index
    %0 = vector.load %arg1[%c0, %c0_0] : memref<8x32xf32, #tpu.memory_space<vmem>>, vector<8x32xf32>
    %c0_1 = arith.constant 0 : index
    %c0_2 = arith.constant 0 : index
    %1 = vector.load %arg2[%c0_1, %c0_2] : memref<32x128xf32, #tpu.memory_space<vmem>>, vector<32x128xf32>
    %cst = arith.constant dense<0.000000e+00> : vector<8x128xf32>
    %2 = tpu.matmul %0, %1, %cst {dimension_numbers = #tpu.dot_dimension_numbers<[1], [0], [0], [1], [0, 0, 1, 1], [], []>} : vector<8x32xf32>, vector<32x128xf32>, vector<8x128xf32> -> vector<8x128xf32>
    %c0_3 = arith.constant 0 : index
    %c0_4 = arith.constant 0 : index
    %3 = vector.load %arg3[%c0_3, %c0_4] : memref<1x128xf32, #tpu.memory_space<vmem>>, vector<1x128xf32>
    %4 = vector.broadcast %3 : vector<1x128xf32> to vector<8x128xf32>
    %5 = arith.addf %2, %4 : vector<8x128xf32>
    %c0_5 = arith.constant 0 : index
    %c0_6 = arith.constant 0 : index
    %6 = vector.load %arg6[%c0_5, %c0_6] : memref<8x128xf32, #tpu.memory_space<vmem>>, vector<8x128xf32>
    tpu.vector_store %arg6[%c0_5, %c0_6], %5 {strides = array<i32>} : memref<8x128xf32, #tpu.memory_space<vmem>>, vector<8x128xf32>,
    %7 = tpu.iota {dimensions = array<i32: 1>} : vector<8x128xi32>
    %8 = tpu.iota {dimensions = array<i32: 0>} : vector<8x128xi32>
    %c8_i32 = arith.constant 8 : i32
    %9 = arith.muli %arg0, %c8_i32 : i32
    %10 = vector.broadcast %9 : i32 to vector<8x128xi32>
    %11 = arith.addi %8, %10 : vector<8x128xi32>
    %c12_i32 = arith.constant 12 : i32
    %12 = vector.broadcast %c12_i32 : i32 to vector<8x128xi32>
    %13 = arith.cmpi slt, %11, %12 : vector<8x128xi32>
    %c4_i32 = arith.constant 4 : i32
    %14 = vector.broadcast %c4_i32 : i32 to vector<8x128xi32>
    %15 = arith.cmpi slt, %7, %14 : vector<8x128xi32>
    %16 = arith.andi %13, %15 : vector<8x128xi1>
    %cst_7 = arith.constant 0.000000e+00 : f32
    %17 = vector.broadcast %cst_7 : f32 to vector<8x128xf32>
    %18 = arith.select %16, %5, %17 : vector<8x128xi1>, vector<8x128xf32>
    %cst_8 = arith.constant -1.000000e+30 : f32
    %19 = vector.broadcast %cst_8 : f32 to vector<8x128xf32>
    %20 = arith.select %16, %5, %19 : vector<8x128xi1>, vector<8x128xf32>
    %cst_9 = arith.constant dense<0xFF800000> : vector<8xf32>
    %21 = vector.multi_reduction <maximumf>, %20, %cst_9 [1] : vector<8x128xf32> to vector<8xf32>
    %22 = vector.shape_cast %21 : vector<8xf32> to vector<8x1xf32>
    %23 = vector.broadcast %22 : vector<8x1xf32> to vector<8x128xf32>
    %24 = arith.subf %20, %23 : vector<8x128xf32>
    %25 = math.exp %24 : vector<8x128xf32>
    %cst_10 = arith.constant dense<0.000000e+00> : vector<8xf32>
    %26 = vector.multi_reduction <add>, %25, %cst_10 [1] : vector<8x128xf32> to vector<8xf32>
    %27 = vector.shape_cast %26 : vector<8xf32> to vector<8x1xf32>
    %28 = math.log %27 : vector<8x1xf32>
    %29 = arith.addf %22, %28 : vector<8x1xf32>
    %c0_11 = arith.constant 0 : index
    %c0_12 = arith.constant 0 : index
    %30 = vector.load %arg4[%c0_11, %c0_12] : memref<8x1xi32, #tpu.memory_space<vmem>>, vector<8x1xi32>
    %31 = vector.broadcast %30 : vector<8x1xi32> to vector<8x128xi32>
    %32 = arith.cmpi eq, %7, %31 : vector<8x128xi32>
    %33 = arith.andi %13, %32 : vector<8x128xi1>
    %cst_13 = arith.constant 1.000000e+00 : f32
    %cst_14 = arith.constant 0.000000e+00 : f32
    %34 = vector.broadcast %cst_13 : f32 to vector<8x128xf32>
    %35 = vector.broadcast %cst_14 : f32 to vector<8x128xf32>
    %36 = arith.select %33, %34, %35 : vector<8x128xi1>, vector<8x128xf32>
    %37 = arith.mulf %18, %36 : vector<8x128xf32>
    %cst_15 = arith.constant dense<0.000000e+00> : vector<8xf32>
    %38 = vector.multi_reduction <add>, %37, %cst_15 [1] : vector<8x128xf32> to vector<8xf32>
    %39 = vector.shape_cast %38 : vector<8xf32> to vector<8x1xf32>
    %c0_16 = arith.constant 0 : index
    %c0_17 = arith.constant 0 : index
    %40 = vector.load %arg5[%c0_16, %c0_17] : memref<1x128xf32, #tpu.memory_space<vmem>>, vector<1x128xf32>
    %41 = vector.broadcast %40 : vector<1x128xf32> to vector<8x128xf32>
    %42 = arith.mulf %41, %36 : vector<8x128xf32>
    %cst_18 = arith.constant dense<0.000000e+00> : vector<8xf32>
    %43 = vector.multi_reduction <add>, %42, %cst_18 [1] : vector<8x128xf32> to vector<8xf32>
    %44 = vector.shape_cast %43 : vector<8xf32> to vector<8x1xf32>
    %45 = arith.subf %29, %39 : vector<8x1xf32>
    %46 = arith.mulf %44, %45 : vector<8x1xf32>
    %c0_19 = arith.constant 0 : index
    %c0_20 = arith.constant 0 : index
    %47 = vector.load %arg7[%c0_19, %c0_20] : memref<8x1xf32, #tpu.memory_space<vmem>>, vector<8x1xf32>
    tpu.vector_store %arg7[%c0_19, %c0_20], %46 {strides = array<i32>} : memref<8x1xf32, #tpu.memory_space<vmem>>, vector<8x1xf32>,
    %c0_21 = arith.constant 0 : index
    %c0_22 = arith.constant 0 : index
    %48 = vector.load %arg8[%c0_21, %c0_22] : memref<8x1xf32, #tpu.memory_space<vmem>>, vector<8x1xf32>
    tpu.vector_store %arg8[%c0_21, %c0_22], %44 {strides = array<i32>} : memref<8x1xf32, #tpu.memory_space<vmem>>, vector<8x1xf32>,
    return
  }
  func.func @transform_0(%arg0: i32) -> (i32, i32) {
    %c0_i32 = arith.constant 0 : i32
    %c0_i32_0 = arith.constant 0 : i32
    return %arg0, %c0_i32 : i32, i32
  }
  func.func @transform_1(%arg0: i32) -> (i32, i32) {
    %c0_i32 = arith.constant 0 : i32
    %c0_i32_0 = arith.constant 0 : i32
    %c0_i32_1 = arith.constant 0 : i32
    return %c0_i32, %c0_i32_0 : i32, i32
  }
  func.func @transform_2(%arg0: i32) -> (i32, i32) {
    %c0_i32 = arith.constant 0 : i32
    %c0_i32_0 = arith.constant 0 : i32
    %c0_i32_1 = arith.constant 0 : i32
    return %c0_i32, %c0_i32_0 : i32, i32
  }
  func.func @transform_3(%arg0: i32) -> (i32, i32) {
    %c0_i32 = arith.constant 0 : i32
    %c0_i32_0 = arith.constant 0 : i32
    return %arg0, %c0_i32 : i32, i32
  }
  func.func @transform_4(%arg0: i32) -> (i32, i32) {
    %c0_i32 = arith.constant 0 : i32
    %c0_i32_0 = arith.constant 0 : i32
    %c0_i32_1 = arith.constant 0 : i32
    return %c0_i32, %c0_i32_0 : i32, i32
  }
  func.func @transform_5(%arg0: i32) -> (i32, i32) {
    %c0_i32 = arith.constant 0 : i32
    %c0_i32_0 = arith.constant 0 : i32
    return %arg0, %c0_i32 : i32, i32
  }
  func.func @transform_6(%arg0: i32) -> (i32, i32) {
    %c0_i32 = arith.constant 0 : i32
    %c0_i32_0 = arith.constant 0 : i32
    return %arg0, %c0_i32 : i32, i32
  }
  func.func @transform_7(%arg0: i32) -> (i32, i32) {
    %c0_i32 = arith.constant 0 : i32
    %c0_i32_0 = arith.constant 0 : i32
    return %arg0, %c0_i32 : i32, i32
  }
}

</mosaic_0001>

<llo_original>
// kernel: tpu_custom_call.1
$region0: #{tpu_custom_call.1}
  #allocation0 [shape = 'u32[]', space=smem, size = 0x4, offset = 0x4, fixed_abs, tag = 'smem constant byte address 0x4 - core index']
  #allocation1 [shape = 'u32[144,128]{1,0:T(1,128)}', space=vmem, size = 0x12000, scoped, tag = 'internal scratch']
  %s0 = inlined_call_operand.vmem [shape: f32[12,32], index: 0, kind: input, shape index: {}]
  %s1 = inlined_call_operand.hbm [shape: f32[32,128], index: 1, kind: input, shape index: {}]
  %s2 = inlined_call_operand.vmem [shape: f32[1,128], index: 2, kind: input, shape index: {}]
  %s3 = inlined_call_operand.vmem [shape: s32[12,1], index: 3, kind: input, shape index: {}]
  %s4 = inlined_call_operand.vmem [shape: f32[1,128], index: 4, kind: input, shape index: {}]
  %s5 = inlined_call_operand.hbm [shape: f32[12,128], index: 5, kind: output, shape index: {0}]
  %s6 = inlined_call_operand.vmem [shape: f32[12,1], index: 6, kind: output, shape index: {1}]
  %s7 = inlined_call_operand.vmem [shape: f32[12,1], index: 7, kind: output, shape index: {2}]
  %8 = xla_tuple %s5, %s6, %s7
  %s9 = sld [smem:[#allocation0]]
  $region73: #{tpu_custom_call.1} parent=0
    _
  %s11 = ssub.s32 1, %s9
  %s12 = scalar_select 0, %s11, %s9
  $region1: #{tpu_custom_call.1} parent=0
    #allocation2 [shape = 'u8[16384]{0}', space=vmem, size = 0x4000, scoped, tag = 'input window, operand 1, single buffered']
    #allocation3 [shape = 's32[2]{0}', space=sflag, size = 0x8, scoped, tag = 'scoped memory for tpu_custom_call.1']
    #allocation4 [shape = 's32[2]{0}', space=sflag, size = 0x8, scoped, tag = 'scoped memory for tpu_custom_call.1']
    #allocation5 [shape = 'u8[8192]{0}', space=vmem, size = 0x2000, scoped, tag = 'output window, operand 0']
    %13 = vsyncpa [#allocation3], 0
    %14 = vsyncpa [#allocation4], 0
    %s15 = scalar_lea.sflag [#allocation4], 1
    %16 = vsyncpa %s15, 0
    loop: start=0, step=1, limit=4
    $region2: #{tpu_custom_call.1} parent=1 // loop_pre_header
      _
    $region3: #{tpu_custom_call.1} parent=1 // loop_header
      %s18 = sphi 0, %s22
      %p19 = scmp.ge.s32.totalorder %s18, 4
      %s28 = sphi 0, %s30
      %s31 = sphi 0, %s28
      %s32 = sphi 0, %s31
      %s48 = sphi 0, %s32
      %s52 = sphi 0, %s52
      %s54 = sphi 0, %s52
      %s55 = sphi 0, %s54
      %s69 = sphi 0, %s55
      %s73 = sphi 0, %s73
      %s75 = sphi 0, %s73
      %s76 = sphi 0, %s75
      %s90 = sphi 0, %s76
      %s96 = sphi 0, %s98
      %s99 = sphi 0, %s96
      %s100 = sphi 0, %s99
      %s116 = sphi 0, %s100
      %s120 = sphi 0, %s120
      %s122 = sphi 0, %s120
      %s123 = sphi 0, %s122
      %s137 = sphi 0, %s123
      %s143 = sphi 0, %s145
      %s146 = sphi 0, %s143
      %s147 = sphi 0, %s146
      %s163 = sphi 0, %s147
      %s169 = sphi 0, %s171
      %s172 = sphi 0, %s169
      %s173 = sphi 0, %s172
      %s189 = sphi 0, %s173
      %s195 = sphi 0, %s197
      %s198 = sphi 0, %s195
      %s199 = sphi 0, %s198
      %s215 = sphi 0, %s199
    $region4: #{tpu_custom_call.1} parent=1 // loop_header_branch
      %21 = sbr.rel (%p19) target = $region8
    $region5: #{tpu_custom_call.1} parent=1 // loop_body
      %s23 = ssub.s32 %s18, 1
      %s24 = ssub.s32 %s18, 2
      %s25 = sadd.s32 %s18, 1
      %s26 = ssub.s32 %s18, %s25
      %p27 = scmp.eq.s32.totalorder %s26, 0
      %s29 = sadd.s32 %s28, 1
      %s30 = scalar_select %p27, %s28, %s29
      %p33 = pneg %p27
      %p34 = scmp.eq.s32.totalorder %s18, 1
      %p35 = por %p33, %p34
      %p36 = scmp.ne.s32.totalorder %s28, %s31
      %p37 = scmp.eq.s32.totalorder %s18, 0
      %p38 = por %p36, %p37
      %p39 = scmp.ne.s32.totalorder %s28, %s31
      %p40 = scmp.eq.s32.totalorder %s23, 1
      %p41 = por %p39, %p40
      %p42 = scmp.ne.s32.totalorder %s31, %s32
      %p43 = scmp.eq.s32.totalorder %s23, 0
      %p44 = por %p42, %p43
      %p45 = scmp.ne.s32.totalorder %s31, %s32
      %p46 = scmp.eq.s32.totalorder %s24, 1
      %p47 = por %p45, %p46
      %p49 = scmp.ne.s32.totalorder %s32, %s48
      %p50 = scmp.eq.s32.totalorder %s24, 0
      %p51 = por %p49, %p50
      %s53 = sadd.s32 %s52, 1
      %p56 = scmp.eq.s32.totalorder %s18, 1
      %p57 = scmp.ne.s32.totalorder %s52, %s54
      %p58 = scmp.eq.s32.totalorder %s18, 0
      %p59 = por %p57, %p58
      %p60 = scmp.ne.s32.totalorder %s52, %s54
      %p61 = scmp.eq.s32.totalorder %s23, 1
      %p62 = por %p60, %p61
      %p63 = scmp.ne.s32.totalorder %s54, %s55
      %p64 = scmp.eq.s32.totalorder %s23, 0
      %p65 = por %p63, %p64
      %p66 = scmp.ne.s32.totalorder %s54, %s55
      %p67 = scmp.eq.s32.totalorder %s24, 1
      %p68 = por %p66, %p67
      %p70 = scmp.ne.s32.totalorder %s55, %s69
      %p71 = scmp.eq.s32.totalorder %s24, 0
      %p72 = por %p70, %p71
      %s74 = sadd.s32 %s73, 1
      %p77 = scmp.eq.s32.totalorder %s18, 1
      %p78 = scmp.ne.s32.totalorder %s73, %s75
      %p79 = scmp.eq.s32.totalorder %s18, 0
      %p80 = por %p78, %p79
      %p81 = scmp.ne.s32.totalorder %s73, %s75
      %p82 = scmp.eq.s32.totalorder %s23, 1
      %p83 = por %p81, %p82
      %p84 = scmp.ne.s32.totalorder %s75, %s76
      %p85 = scmp.eq.s32.totalorder %s23, 0
      %p86 = por %p84, %p85
      %p87 = scmp.ne.s32.totalorder %s75, %s76
      %p88 = scmp.eq.s32.totalorder %s24, 1
      %p89 = por %p87, %p88
      %p91 = scmp.ne.s32.totalorder %s76, %s90
      %p92 = scmp.eq.s32.totalorder %s24, 0
      %p93 = por %p91, %p92
      %s94 = ssub.s32 %s18, %s25
      %p95 = scmp.eq.s32.totalorder %s94, 0
      %s97 = sadd.s32 %s96, 1
      %s98 = scalar_select %p95, %s96, %s97
      %p101 = pneg %p95
      %p102 = scmp.eq.s32.totalorder %s18, 1
      %p103 = por %p101, %p102
      %p104 = scmp.ne.s32.totalorder %s96, %s99
      %p105 = scmp.eq.s32.totalorder %s18, 0
      %p106 = por %p104, %p105
      %p107 = scmp.ne.s32.totalorder %s96, %s99
      %p108 = scmp.eq.s32.totalorder %s23, 1
      %p109 = por %p107, %p108
      %p110 = scmp.ne.s32.totalorder %s99, %s100
      %p111 = scmp.eq.s32.totalorder %s23, 0
      %p112 = por %p110, %p111
      %p113 = scmp.ne.s32.totalorder %s99, %s100
      %p114 = scmp.eq.s32.totalorder %s24, 1
      %p115 = por %p113, %p114
      %p117 = scmp.ne.s32.totalorder %s100, %s116
      %p118 = scmp.eq.s32.totalorder %s24, 0
      %p119 = por %p117, %p118
      %s121 = sadd.s32 %s120, 1
      %p124 = scmp.eq.s32.totalorder %s18, 1
      %p125 = scmp.ne.s32.totalorder %s120, %s122
      %p126 = scmp.eq.s32.totalorder %s18, 0
      %p127 = por %p125, %p126
      %p128 = scmp.ne.s32.totalorder %s120, %s122
      %p129 = scmp.eq.s32.totalorder %s23, 1
      %p130 = por %p128, %p129
      %p131 = scmp.ne.s32.totalorder %s122, %s123
      %p132 = scmp.eq.s32.totalorder %s23, 0
      %p133 = por %p131, %p132
      %p134 = scmp.ne.s32.totalorder %s122, %s123
      %p135 = scmp.eq.s32.totalorder %s24, 1
      %p136 = por %p134, %p135
      %p138 = scmp.ne.s32.totalorder %s123, %s137
      %p139 = scmp.eq.s32.totalorder %s24, 0
      %p140 = por %p138, %p139
      %s141 = ssub.s32 %s18, %s25
      %p142 = scmp.eq.s32.totalorder %s141, 0
      %s144 = sadd.s32 %s143, 1
      %s145 = scalar_select %p142, %s143, %s144
      %p148 = pneg %p142
      %p149 = scmp.eq.s32.totalorder %s18, 1
      %p150 = por %p148, %p149
      %p151 = scmp.ne.s32.totalorder %s143, %s146
      %p152 = scmp.eq.s32.totalorder %s18, 0
      %p153 = por %p151, %p152
      %p154 = scmp.ne.s32.totalorder %s143, %s146
      %p155 = scmp.eq.s32.totalorder %s23, 1
      %p156 = por %p154, %p155
      %p157 = scmp.ne.s32.totalorder %s146, %s147
      %p158 = scmp.eq.s32.totalorder %s23, 0
      %p159 = por %p157, %p158
      %p160 = scmp.ne.s32.totalorder %s146, %s147
      %p161 = scmp.eq.s32.totalorder %s24, 1
      %p162 = por %p160, %p161
      %p164 = scmp.ne.s32.totalorder %s147, %s163
      %p165 = scmp.eq.s32.totalorder %s24, 0
      %p166 = por %p164, %p165
      %s167 = ssub.s32 %s18, %s25
      %p168 = scmp.eq.s32.totalorder %s167, 0
      %s170 = sadd.s32 %s169, 1
      %s171 = scalar_select %p168, %s169, %s170
      %p174 = pneg %p168
      %p175 = scmp.eq.s32.totalorder %s18, 1
      %p176 = por %p174, %p175
      %p177 = scmp.ne.s32.totalorder %s169, %s172
      %p178 = scmp.eq.s32.totalorder %s18, 0
      %p179 = por %p177, %p178
      %p180 = scmp.ne.s32.totalorder %s169, %s172
      %p181 = scmp.eq.s32.totalorder %s23, 1
      %p182 = por %p180, %p181
      %p183 = scmp.ne.s32.totalorder %s172, %s173
      %p184 = scmp.eq.s32.totalorder %s23, 0
      %p185 = por %p183, %p184
      %p186 = scmp.ne.s32.totalorder %s172, %s173
      %p187 = scmp.eq.s32.totalorder %s24, 1
      %p188 = por %p186, %p187
      %p190 = scmp.ne.s32.totalorder %s173, %s189
      %p191 = scmp.eq.s32.totalorder %s24, 0
      %p192 = por %p190, %p191
      %s193 = ssub.s32 %s18, %s25
      %p194 = scmp.eq.s32.totalorder %s193, 0
      %s196 = sadd.s32 %s195, 1
      %s197 = scalar_select %p194, %s195, %s196
      %p200 = pneg %p194
      %p201 = scmp.eq.s32.totalorder %s18, 1
      %p202 = por %p200, %p201
      %p203 = scmp.ne.s32.totalorder %s195, %s198
      %p204 = scmp.eq.s32.totalorder %s18, 0
      %p205 = por %p203, %p204
      %p206 = scmp.ne.s32.totalorder %s195, %s198
      %p207 = scmp.eq.s32.totalorder %s23, 1
      %p208 = por %p206, %p207
      %p209 = scmp.ne.s32.totalorder %s198, %s199
      %p210 = scmp.eq.s32.totalorder %s23, 0
      %p211 = por %p209, %p210
      %p212 = scmp.ne.s32.totalorder %s198, %s199
      %p213 = scmp.eq.s32.totalorder %s24, 1
      %p214 = por %p212, %p213
      %p216 = scmp.ne.s32.totalorder %s199, %s215
      %p217 = scmp.eq.s32.totalorder %s24, 0
      %p218 = por %p216, %p217
      %p219 = scmp.le.s32.totalorder 1, %s18
      %p220 = scmp.lt.s32.totalorder %s18, 3
      %p221 = pnand %p219, %p220
      %p222 = pneg %p221
      // Predicated region
      $region9: #{tpu_custom_call.1} parent=5 // pred_check
        _
      $region10: #{tpu_custom_call.1} parent=5 // pred_check_branch
        %224 = sbr.rel (%p221) target = $region12
      $region11: #{tpu_custom_call.1} parent=5 // pred_region
        %s225 = ssub.s32 %s18, 1
        // Predicated region
        $region13: #{tpu_custom_call.1} parent=11 // pred_check
          %p226 = pneg %p65
        $region14: #{tpu_custom_call.1} parent=11 // pred_check_branch
          %228 = sbr.rel (%p226) target = $region16
        $region15: #{tpu_custom_call.1} parent=11 // pred_region
          %s230 = ssub.s32 512, 512
          %231 = vsyncadd [#allocation3], %s230
          %s232 = sshll.u32 [#allocation2], 4
          %s233 = int_to_ptr.vmem [resolvable:$true] %s232
          %238 = dma.hbm_to_vmem [thread:$0]  %s1, 512, %s233, [#allocation3], 128, 128, 8
        $region16: #{tpu_custom_call.1} parent=11 // pred_fallthru
          _
        // Predicated region
        $region17: #{tpu_custom_call.1} parent=11 // pred_check
          %p239 = pneg %p86
        $region18: #{tpu_custom_call.1} parent=11 // pred_check_branch
          %241 = sbr.rel (%p239) target = $region20
        $region19: #{tpu_custom_call.1} parent=11 // pred_region
          _
        $region20: #{tpu_custom_call.1} parent=11 // pred_fallthru
          _
        // Predicated region
        $region21: #{tpu_custom_call.1} parent=11 // pred_check
          %p242 = pneg %p133
        $region22: #{tpu_custom_call.1} parent=11 // pred_check_branch
          %244 = sbr.rel (%p242) target = $region24
        $region23: #{tpu_custom_call.1} parent=11 // pred_region
          _
        $region24: #{tpu_custom_call.1} parent=11 // pred_fallthru
          _
      $region12: #{tpu_custom_call.1} parent=5 // pred_fallthru
        _
      %p245 = scmp.lt.s32.totalorder %s18, 2
      // Predicated region
      $region25: #{tpu_custom_call.1} parent=5 // pred_check
        %p246 = pneg %p245
      $region26: #{tpu_custom_call.1} parent=5 // pred_check_branch
        %248 = sbr.rel (%p246) target = $region28
      $region27: #{tpu_custom_call.1} parent=5 // pred_region
        // Predicated region
        $region29: #{tpu_custom_call.1} parent=27 // pred_check
          %p249 = pneg %p38
        $region30: #{tpu_custom_call.1} parent=27 // pred_check_branch
          %251 = sbr.rel (%p249) target = $region32
        $region31: #{tpu_custom_call.1} parent=27 // pred_region
          %p252 = scmp.lt.s32.totalorder %s18, 1
          %s253 = scalar_select %p252, %s18, 1
          %s254 = smul.addr %s253, 8
          %s255 = scalar_lea.vmem %s0, %s254
        $region32: #{tpu_custom_call.1} parent=27 // pred_fallthru
          _
        // Predicated region
        $region33: #{tpu_custom_call.1} parent=27 // pred_check
          %p256 = pneg %p106
        $region34: #{tpu_custom_call.1} parent=27 // pred_check_branch
          %258 = sbr.rel (%p256) target = $region36
        $region35: #{tpu_custom_call.1} parent=27 // pred_region
          %p259 = scmp.lt.s32.totalorder %s18, 1
          %s260 = scalar_select %p259, %s18, 1
          %s261 = smul.addr %s260, 8
          %s262 = scalar_lea.vmem %s3, %s261
        $region36: #{tpu_custom_call.1} parent=27 // pred_fallthru
          _
      $region28: #{tpu_custom_call.1} parent=5 // pred_fallthru
        _
      %p263 = scmp.le.s32.totalorder 1, %s18
      %p264 = scmp.lt.s32.totalorder %s18, 3
      %p265 = pnand %p263, %p264
      %p266 = pneg %p265
      // Predicated region
      $region37: #{tpu_custom_call.1} parent=5 // pred_check
        _
      $region38: #{tpu_custom_call.1} parent=5 // pred_check_branch
        %268 = sbr.rel (%p265) target = $region40
      $region39: #{tpu_custom_call.1} parent=5 // pred_region
        %s269 = ssub.s32 %s18, 1
        // Predicated region
        $region41: #{tpu_custom_call.1} parent=39 // pred_check
          %p270 = pneg %p65
        $region42: #{tpu_custom_call.1} parent=39 // pred_check_branch
          %272 = sbr.rel (%p270) target = $region44
        $region43: #{tpu_custom_call.1} parent=39 // pred_region
          %273 = dma.done [#allocation3], 512
        $region44: #{tpu_custom_call.1} parent=39 // pred_fallthru
          _
        %p274 = scmp.lt.s32.totalorder %s23, 1
        %s275 = scalar_select %p274, %s23, 1
        %s276 = smul.addr %s275, 8
        %s277 = scalar_lea.vmem %s0, %s276
        %p278 = pneg %p44
        %p279 = pneg %p41
        %p280 = pneg %p65
        %p281 = pneg %p62
        %p282 = pneg %p86
        %p283 = pneg %p83
        %p284 = scmp.lt.s32.totalorder %s23, 1
        %s285 = scalar_select %p284, %s23, 1
        %s286 = smul.addr %s285, 8
        %s287 = scalar_lea.vmem %s3, %s286
        %p288 = pneg %p112
        %p289 = pneg %p109
        %p290 = pneg %p133
        %p291 = pneg %p130
        %p292 = pneg %p159
        %p293 = pneg %p156
        %s294 = sand.u32 %s146, 1
        %s295 = scalar_lea.sflag [#allocation4], %s294
        %s296 = sand.u32 %s146, 1
        %s297 = smul.addr %s296, 8
        %s298 = scalar_lea.vmem [#allocation5], %s297
        %p299 = pneg %p185
        %p300 = pneg %p182
        %p301 = scmp.lt.s32.totalorder %s23, 1
        %s302 = scalar_select %p301, %s23, 1
        %s303 = smul.addr %s302, 8
        %s304 = scalar_lea.vmem %s6, %s303
        %p305 = pneg %p211
        %p306 = pneg %p208
        %p307 = scmp.lt.s32.totalorder %s23, 1
        %s308 = scalar_select %p307, %s23, 1
        %s309 = smul.addr %s308, 8
        %s310 = scalar_lea.vmem %s7, %s309
        %p311 = scmp.lt.s32.totalorder %s23, 1
        %s312 = scalar_select %p311, %s23, 1
        %s313 = smul.addr %s312, 8
        %s314 = scalar_lea.vmem %s0, %s313
        %p315 = scmp.lt.s32.totalorder %s23, 1
        %s316 = scalar_select %p315, %s23, 1
        %s317 = smul.addr %s316, 8
        %s318 = scalar_lea.vmem %s3, %s317
        %p319 = scmp.lt.s32.totalorder %s23, 1
        %s320 = scalar_select %p319, %s23, 1
        %s321 = smul.addr %s320, 8
        %s322 = scalar_lea.vmem %s6, %s321
        %p323 = scmp.lt.s32.totalorder %s23, 1
        %s324 = scalar_select %p323, %s23, 1
        %s325 = smul.addr %s324, 8
        %s326 = scalar_lea.vmem %s7, %s325
        %v327 = vld [vmem:[%s314] sm:$0xff]
        %v328 = vld [vmem:[#allocation2] sm:$0xff]
        %v329 = vld [vmem:[#allocation2 + $0x8] sm:$0xff]
        %v330 = vld [vmem:[#allocation2 + $0x10] sm:$0xff]
        %v331 = vld [vmem:[#allocation2 + $0x18] sm:$0xff]
        %v332 = vld [vmem:[%s2] sm:$0x1]
        %v334 = vlaneseq
        %v335 = vshrl.u32 %v334, 7
        %v336 = vsub.s32 0, %v335
        %v337 = vrot.slane %v332, %v336
        %vm339 = vcmask 261120
        %v341 = vsel %vm339, %v327, 0
        %343 = vmatprep.subr.mxu0 0.0
        %344 = vmatpush1.msra.mxu0 0.0
        %345 = vmatprep.subr.mxu0 0.0
        %346 = vmatpush1.msra.mxu0 0.0
        %347 = vmatprep.subr.mxu0 0.0
        %348 = vmatpush1.msra.mxu0 0.0
        %349 = vmatprep.subr.mxu0 0.0
        %350 = vmatpush1.msra.mxu0 0.0
        %351 = vmatprep.subr.mxu0 0.0
        %352 = vmatpush1.msra.mxu0 0.0
        %353 = vmatprep.subr.mxu0 0.0
        %354 = vmatpush1.msra.mxu0 0.0
        %355 = vmatprep.subr.mxu0 0.0
        %356 = vmatpush1.msra.mxu0 0.0
        %357 = vmatprep.subr.mxu0 0.0
        %358 = vmatpush1.msra.mxu0 0.0
        %359 = vmatprep.subr.mxu0 0.0
        %360 = vmatpush1.msra.mxu0 0.0
        %361 = vmatprep.subr.mxu0 0.0
        %362 = vmatpush1.msra.mxu0 0.0
        %363 = vmatprep.subr.mxu0 0.0
        %364 = vmatpush1.msra.mxu0 0.0
        %365 = vmatprep.subr.mxu0 0.0
        %366 = vmatpush1.msra.mxu0 0.0
        %367 = vmatprep.subr.mxu0 0.0
        %368 = vmatpush1.msra.mxu0 %v331
        %369 = vmatprep.subr.mxu0 0.0
        %370 = vmatpush1.msra.mxu0 %v330
        %371 = vmatprep.subr.mxu0 0.0
        %372 = vmatpush1.msra.mxu0 %v329
        %373 = vmatprep.subr.mxu0 0.0
        %374 = vmatpush1.msra.mxu0 %v328
        %375 = vmatprep.subr.mxu0 0.0
        %376 = vmatpush2.msra.mxu0 0.0
        %377 = vmatprep.subr.mxu0 0.0
        %378 = vmatpush2.msra.mxu0 0.0
        %379 = vmatprep.subr.mxu0 0.0
        %380 = vmatpush2.msra.mxu0 0.0
        %381 = vmatprep.subr.mxu0 0.0
        %382 = vmatpush2.msra.mxu0 0.0
        %383 = vmatprep.subr.mxu0 0.0
        %384 = vmatpush2.msra.mxu0 0.0
        %385 = vmatprep.subr.mxu0 0.0
        %386 = vmatpush2.msra.mxu0 0.0
        %387 = vmatprep.subr.mxu0 0.0
        %388 = vmatpush2.msra.mxu0 0.0
        %389 = vmatprep.subr.mxu0 0.0
        %390 = vmatpush2.msra.mxu0 0.0
        %391 = vmatprep.subr.mxu0 0.0
        %392 = vmatpush2.msra.mxu0 0.0
        %393 = vmatprep.subr.mxu0 0.0
        %394 = vmatpush2.msra.mxu0 0.0
        %395 = vmatprep.subr.mxu0 0.0
        %396 = vmatpush2.msra.mxu0 0.0
        %397 = vmatprep.subr.mxu0 0.0
        %398 = vmatpush2.msra.mxu0 0.0
        %399 = vmatprep.subr.mxu0 0.0
        %400 = vmatpush2.msra.mxu0 0.0
        %401 = vmatprep.subr.mxu0 0.0
        %402 = vmatpush2.msra.mxu0 0.0
        %403 = vmatprep.subr.mxu0 0.0
        %404 = vmatpush2.msra.mxu0 0.0
        %405 = vmatprep.subr.mxu0 0.0
        %406 = vmatpush2.msra.mxu0 0.0
        %407 = vmatprep.mubr.f32.mxu0 0.0
        %408 = vmatmul.mubr.f32.gmra.mxu0 %v341
        %v409 = vpop.f32.mrf.mxu0
        %v410 = vadd.f32 %v337, %v409
        %v411 = vpop.f32.mrf.mxu0
        %412 = vdwg.mxu0
        %413 = vst [vmem:[%s298] sm:$0xff] %v410
        %v414 = vlaneseq
        %v415 = vand.u32 %v414, 127
        %v416 = vlaneseq
        %v417 = vshrl.u32 %v416, 7
        %s418 = smul.u32 %s23, 8
        %v419 = vstv %s418
        %v420 = vadd.s32 %v417, %v419
        %vm421 = vcmp.lt.s32.totalorder %v420, 12
        %vm422 = vcmp.lt.s32.totalorder %v415, 4
        %vm423 = vmand %vm421, %vm422
        %v424 = vsel %vm423, %v410, 0.0
        %v425 = vsel %vm423, %v410, -1e+30
        %426 = vmax.xlane.f32.xlu0 %v425
        %v427 = vpop.xlane.xlu0 %426
        %v428 = vsub.f32 %v425, %v427
        %v429 = vmul.f32 %v428, 1.442695
        %v430 = vpow.pop %v429
        %431 = vadd.xlane.f32.xlu0 %v430
        %v432 = vpop.xlane.xlu0 %431
        %v433 = vlog2.pop %v432
        %v434 = vmul.f32 %v433, 0.6931472
        %v435 = vadd.f32 %v427, %v434
        %v436 = vld [vmem:[%s318] sm:$0xff]
        %437 = vset.pattern.permute.xlu0 0
        %438 = vperm.xlu0 %437, %v436
        %v439 = vpop.permute.xlu0 %438
        %vm440 = vcmp.eq.s32.totalorder %v415, %v439
        %vm441 = vmand %vm421, %vm440
        %v442 = vsel %vm441, 1.0, 0.0
        %v443 = vmul.f32 %v424, %v442
        %444 = vadd.xlane.f32.xlu0 %v443
        %v445 = vpop.xlane.xlu0 %444
        %v446 = vld [vmem:[%s4] sm:$0x1]
        %v448 = vlaneseq
        %v449 = vshrl.u32 %v448, 7
        %v450 = vsub.s32 0, %v449
        %v451 = vrot.slane %v446, %v450
        %v453 = vmul.f32 %v451, %v442
        %454 = vadd.xlane.f32.xlu0 %v453
        %v455 = vpop.xlane.xlu0 %454
        %v456 = vsub.f32 %v435, %v445
        %v457 = vmul.f32 %v455, %v456
        %vm458 = vcmask 7168
        %459 = vst.msk [vmem:[%s322] sm:$0xff] %vm458, %v457
        %460 = vst.msk [vmem:[%s326] sm:$0xff] %vm458, %v455
        %s461 = sand.u32 %s146, 1
        %s462 = scalar_lea.sflag [#allocation4], %s461
        %s463 = sand.u32 %s146, 1
        %s464 = smul.addr %s463, 8
        %s465 = scalar_lea.vmem [#allocation5], %s464
        %p466 = scmp.lt.s32.totalorder %s23, 1
        %s467 = scalar_select %p466, %s23, 1
        %s468 = smul.addr %s467, 8
        %s469 = scalar_lea.vmem %s6, %s468
        %p470 = scmp.lt.s32.totalorder %s23, 1
        %s471 = scalar_select %p470, %s23, 1
        %s472 = smul.addr %s471, 8
        %s473 = scalar_lea.vmem %s7, %s472
        // Predicated region
        $region45: #{tpu_custom_call.1} parent=39 // pred_check
          %p474 = pneg %p156
        $region46: #{tpu_custom_call.1} parent=39 // pred_check_branch
          %476 = sbr.rel (%p474) target = $region48
        $region47: #{tpu_custom_call.1} parent=39 // pred_region
          %s478 = ssub.s32 128, 128
          %479 = vsyncadd %s462, %s478
          %s480 = smul.addr %s23, 128
          %s481 = scalar_lea.hbm %s5, %s480
          %s483 = sshll.u32 %s465, 4
          %s484 = int_to_ptr.vmem [resolvable:$true] %s483
          %486 = dma.vmem_to_hbm [thread:$0]  %s484, 128, %s481, %s462
        $region48: #{tpu_custom_call.1} parent=39 // pred_fallthru
          _
        // Predicated region
        $region49: #{tpu_custom_call.1} parent=39 // pred_check
          %p487 = pneg %p182
        $region50: #{tpu_custom_call.1} parent=39 // pred_check_branch
          %489 = sbr.rel (%p487) target = $region52
        $region51: #{tpu_custom_call.1} parent=39 // pred_region
          _
        $region52: #{tpu_custom_call.1} parent=39 // pred_fallthru
          _
        // Predicated region
        $region53: #{tpu_custom_call.1} parent=39 // pred_check
          %p490 = pneg %p208
        $region54: #{tpu_custom_call.1} parent=39 // pred_check_branch
          %492 = sbr.rel (%p490) target = $region56
        $region55: #{tpu_custom_call.1} parent=39 // pred_region
          _
        $region56: #{tpu_custom_call.1} parent=39 // pred_fallthru
          _
      $region40: #{tpu_custom_call.1} parent=5 // pred_fallthru
        _
      %p493 = scmp.le.s32.totalorder 2, %s18
      // Predicated region
      $region57: #{tpu_custom_call.1} parent=5 // pred_check
        %p494 = pneg %p493
      $region58: #{tpu_custom_call.1} parent=5 // pred_check_branch
        %496 = sbr.rel (%p494) target = $region60
      $region59: #{tpu_custom_call.1} parent=5 // pred_region
        %s497 = ssub.s32 %s18, 2
        // Predicated region
        $region61: #{tpu_custom_call.1} parent=59 // pred_check
          %p498 = pneg %p162
        $region62: #{tpu_custom_call.1} parent=59 // pred_check_branch
          %500 = sbr.rel (%p498) target = $region64
        $region63: #{tpu_custom_call.1} parent=59 // pred_region
          %s501 = sand.u32 %s147, 1
          %s502 = scalar_lea.sflag [#allocation4], %s501
          %s503 = sand.u32 %s147, 1
          %s504 = smul.addr %s503, 8
          %s505 = scalar_lea.vmem [#allocation5], %s504
          %506 = dma.done %s502, 128
        $region64: #{tpu_custom_call.1} parent=59 // pred_fallthru
          _
        // Predicated region
        $region65: #{tpu_custom_call.1} parent=59 // pred_check
          %p507 = pneg %p188
        $region66: #{tpu_custom_call.1} parent=59 // pred_check_branch
          %509 = sbr.rel (%p507) target = $region68
        $region67: #{tpu_custom_call.1} parent=59 // pred_region
          %p510 = scmp.lt.s32.totalorder %s24, 1
          %s511 = scalar_select %p510, %s24, 1
          %s512 = smul.addr %s511, 8
          %s513 = scalar_lea.vmem %s6, %s512
        $region68: #{tpu_custom_call.1} parent=59 // pred_fallthru
          _
        // Predicated region
        $region69: #{tpu_custom_call.1} parent=59 // pred_check
          %p514 = pneg %p214
        $region70: #{tpu_custom_call.1} parent=59 // pred_check_branch
          %516 = sbr.rel (%p514) target = $region72
        $region71: #{tpu_custom_call.1} parent=59 // pred_region
          %p517 = scmp.lt.s32.totalorder %s24, 1
          %s518 = scalar_select %p517, %s24, 1
          %s519 = smul.addr %s518, 8
          %s520 = scalar_lea.vmem %s7, %s519
        $region72: #{tpu_custom_call.1} parent=59 // pred_fallthru
          _
      $region60: #{tpu_custom_call.1} parent=5 // pred_fallthru
        _
    $region6: #{tpu_custom_call.1} parent=1 // loop_footer
      %s22 = sadd.s32 1, %s18
    $region7: #{tpu_custom_call.1} parent=1 // loop_footer_branch
      %17 = sbr.rel target = $region3
    $region8: #{tpu_custom_call.1} parent=1 // loop_exit
      _
    %521 = vsyncpa [#allocation3], 1
    %s522 = scalar_lea.sflag [#allocation3], 1
    %523 = vsyncpa %s522, 1
    %524 = vsyncpa [#allocation4], 1
    %s525 = scalar_lea.sflag [#allocation4], 1
    %526 = vsyncpa %s525, 1

</llo_original>
